<compile_context>
chip_gen: v6e
topology: v6e:2x2x1
jax: 0.10.0
libtpu: 0.0.40
codegen_flags: <defaults>
</compile_context>

<pallas_src>
import jax
import jax.numpy as jnp
from jax.experimental import pallas as pl
from jax.experimental.pallas import tpu as pltpu

LANE = 128  # lane width; batch tiles are multiples of this (also the v5e MXU dim)


def mlp_kernel(xT_ref, w1_ref, b1_ref, w2_ref, b2_ref, w3_ref, b3_ref, oT_ref):
    xT = xT_ref[...]                                        # (in, bm) bf16, batch on lanes

    # h1 = relu(W1 @ x^T + b1) : (hidden, bm), f32 accumulation on the MXU.
    h1 = jnp.dot(w1_ref[...], xT, preferred_element_type=jnp.float32) + b1_ref[...]
    h1 = jnp.maximum(h1, 0.0).astype(jnp.bfloat16)

    # h2 = relu(W2 @ h1 + b2) : (hidden, bm)
    h2 = jnp.dot(w2_ref[...], h1, preferred_element_type=jnp.float32) + b2_ref[...]
    h2 = jnp.maximum(h2, 0.0).astype(jnp.bfloat16)

    # logits = W3 @ h2 + b3 : (out, bm); numerically-stable softmax over the feature
    # axis (sublanes here == torch's dim=1 after the wrapper transposes back).
    logits = jnp.dot(w3_ref[...], h2, preferred_element_type=jnp.float32) + b3_ref[...]
    m = jnp.max(logits, axis=0, keepdims=True)
    e = jnp.exp(logits - m)
    denom = jnp.sum(e, axis=0, keepdims=True)
    oT_ref[...] = (e / denom).astype(oT_ref.dtype)          # exact divide; lane-dense store


def _round_up(n, m):
    return ((n + m - 1) // m) * m


def _pick_batch_tile(batch, target=1024):
    """128-aligned lane tile minimizing padding; >=2 grid steps when batch > 128."""
    if batch <= LANE:
        return LANE
    # Cap the tile so batch > one tile always yields a balanced >=2-step grid (v7x
    # megacore), and at `target` rows (512-1024 reaches ~85% of HBM roofline).
    max_bm = max(LANE, min(target, _round_up(pl.cdiv(batch, 2), LANE)))
    best_bm = LANE
    best_pad = _round_up(batch, LANE) - batch
    bm = LANE
    while bm <= max_bm:
        pad = _round_up(batch, bm) - batch
        if pad < best_pad or (pad == best_pad and bm > best_bm):
            best_bm, best_pad = bm, pad
        bm += LANE
    return best_bm


def _vmem_capacity_bytes():
    try:
        return int(pltpu.get_tpu_info().vmem_capacity_bytes)
    except Exception:
        return 64 * 1024 * 1024      # conservative fallback: v7x per-core physical VMEM


def _vmem_limit_bytes(bm, input_size, hidden_size, output_size):
    bf16, f32 = 2, 4
    io = 2 * input_size * bm * bf16 + 2 * output_size * bm * f32         # double-buffered x^T / out tiles
    weights = 2 * (hidden_size * input_size + hidden_size * hidden_size
                   + output_size * hidden_size) * bf16                    # double-buffered resident weights
    biases = 2 * (2 * hidden_size + output_size) * f32
    live = (2 * hidden_size + 2 * output_size) * bm * f32                 # h1 / h2 / logits / exp
    need = io + weights + biases + live
    cap = int(0.75 * _vmem_capacity_bytes())                              # generation-aware ceiling
    return int(min(cap, max(4 * 1024 * 1024, 2 * need)))


def mlp_forward(x, w1, b1, w2, b2, w3, b3, *, batch_tile=None):
    """MLP.forward: din.view(-1, input_size) -> relu -> relu -> softmax(dim=1).

    Weights are in torch's native (out_features, in_features) layout; biases (out_features,).
    """
    hidden_size, input_size = w1.shape
    output_size = w3.shape[0]

    x2d = x.reshape(-1, input_size)
    batch = x2d.shape[0]

    bm = batch_tile if batch_tile is not None else _pick_batch_tile(batch)
    bm = _round_up(bm, LANE)
    padded_batch = _round_up(batch, bm)
    grid = (padded_batch // bm,)

    # Transposed bf16 activations: batch on the lane axis, lane-dense DMA in and out.
    xT = x2d.astype(jnp.bfloat16).T                                       # (in, batch)
    if padded_batch != batch:
        xT = jnp.pad(xT, ((0, 0), (0, padded_batch - batch)))

    w1b = w1.astype(jnp.bfloat16)
    w2b = w2.astype(jnp.bfloat16)
    w3b = w3.astype(jnp.bfloat16)
    b1f = b1.reshape(hidden_size, 1).astype(jnp.float32)
    b2f = b2.reshape(hidden_size, 1).astype(jnp.float32)
    b3f = b3.reshape(output_size, 1).astype(jnp.float32)

    flops = 2 * padded_batch * (input_size * hidden_size
                                + hidden_size * hidden_size
                                + hidden_size * output_size)
    bytes_accessed = (
        xT.size * xT.dtype.itemsize
        + sum(a.size * a.dtype.itemsize for a in (w1b, b1f, w2b, b2f, w3b, b3f))
        + padded_batch * output_size * 4)
    cost = pl.CostEstimate(flops=flops,
                           transcendentals=padded_batch * output_size,
                           bytes_accessed=bytes_accessed)

    col_map = lambda i: (0, i)       # tile the lane (batch) axis
    full_map = lambda i: (0, 0)      # resident weights / biases (block index never changes)

    outT = pl.pallas_call(
        mlp_kernel,
        out_shape=jax.ShapeDtypeStruct((output_size, padded_batch), jnp.float32),
        grid_spec=pltpu.PrefetchScalarGridSpec(
            num_scalar_prefetch=0,
            grid=grid,
            in_specs=[
                pl.BlockSpec((input_size, bm), col_map),              # x^T tile (pipelined per step)
                pl.BlockSpec((hidden_size, input_size), full_map),    # W1
                pl.BlockSpec((hidden_size, 1), full_map),             # b1
                pl.BlockSpec((hidden_size, hidden_size), full_map),   # W2
                pl.BlockSpec((hidden_size, 1), full_map),             # b2
                pl.BlockSpec((output_size, hidden_size), full_map),   # W3
                pl.BlockSpec((output_size, 1), full_map),             # b3
            ],
            out_specs=pl.BlockSpec((output_size, bm), col_map),       # lane-dense output store
        ),
        compiler_params=pltpu.CompilerParams(
            dimension_semantics=("parallel",),
            vmem_limit_bytes=_vmem_limit_bytes(bm, input_size, hidden_size, output_size),
        ),
        cost_estimate=cost,
    )(xT, w1b, b1f, w2b, b2f, w3b, b3f)

    out = outT.T                                                        # (padded_batch, out) like torch
    return out[:batch] if padded_batch != batch else out


def ref_forward(x, w1, b1, w2, b2, w3, b3):
    """Pure-JAX reference with the same bf16-operand / f32-accumulate math."""
    input_size = w1.shape[1]
    xb = x.reshape(-1, input_size).astype(jnp.bfloat16)
    h = jnp.dot(xb, w1.T.astype(jnp.bfloat16), preferred_element_type=jnp.float32) + b1[None, :]
    h = jnp.maximum(h, 0.0).astype(jnp.bfloat16)
    h = jnp.dot(h, w2.T.astype(jnp.bfloat16), preferred_element_type=jnp.float32) + b2[None, :]
    h = jnp.maximum(h, 0.0).astype(jnp.bfloat16)
    logits = jnp.dot(h, w3.T.astype(jnp.bfloat16), preferred_element_type=jnp.float32) + b3[None, :]
    return jax.nn.softmax(logits, axis=1)


def init_params(key, input_size, hidden_size, output_size):
    """Deterministic init mimicking nn.Linear's U(-1/sqrt(fan_in), 1/sqrt(fan_in)).

    Weights are produced in torch's native (out_features, in_features) layout.
    """
    ks = jax.random.split(key, 6)

    def linear(kw, kb, fan_in, fan_out):
        bound = 1.0 / (fan_in ** 0.5)
        w = jax.random.uniform(kw, (fan_out, fan_in), jnp.float32, -bound, bound)
        b = jax.random.uniform(kb, (fan_out,), jnp.float32, -bound, bound)
        return w, b

    w1, b1 = linear(ks[0], ks[1], input_size, hidden_size)
    w2, b2 = linear(ks[2], ks[3], hidden_size, hidden_size)
    w3, b3 = linear(ks[4], ks[5], hidden_size, output_size)
    return w1, b1, w2, b2, w3, b3


if __name__ == "__main__":
    input_size, hidden_size, output_size = 32, 64, 16

    # Leading dims are flattened by the forward (din.view(-1, input_size)); 30*10 = 300
    # rows is deliberately not a multiple of 128, exercising wrapper padding and a
    # multi-step (pipelined, megacore-shardable) grid with bm=128.
    key = jax.random.PRNGKey(0)
    kx, kp = jax.random.split(key)
    x = jax.random.normal(kx, (30, 10, input_size), jnp.float32)
    params = init_params(kp, input_size, hidden_size, output_size)

    out = jax.block_until_ready(mlp_forward(x, *params))
    ref = ref_forward(x, *params)

    assert out.shape == (300, output_size), out.shape
    assert jnp.allclose(jnp.sum(out, axis=1), 1.0, atol=1e-3), "softmax rows do not sum to 1"
    assert jnp.allclose(out, ref, atol=2e-3, rtol=2e-3), "mismatch vs reference"

    print("KERNEL_OK")
</pallas_src>

<mosaic_0001>
module attributes {stable_mosaic.version = 11 : i64} {
  func.func @mlp_kernel(%arg0: i32, %arg1: memref<32x128xbf16, #tpu.memory_space<vmem>>, %arg2: memref<64x32xbf16, #tpu.memory_space<vmem>>, %arg3: memref<64x1xf32, #tpu.memory_space<vmem>>, %arg4: memref<64x64xbf16, #tpu.memory_space<vmem>>, %arg5: memref<64x1xf32, #tpu.memory_space<vmem>>, %arg6: memref<16x64xbf16, #tpu.memory_space<vmem>>, %arg7: memref<16x1xf32, #tpu.memory_space<vmem>>, %arg8: memref<16x128xf32, #tpu.memory_space<vmem>>) attributes {dimension_semantics = [#tpu.dimension_semantics<parallel>], iteration_bounds = array<i64: 3>, scalar_prefetch = 0 : i64, scratch_operands = 0 : i64, tpu.core_type = #tpu.core_type<tc>, window_params = [{transform_indices = @transform_0, window_bounds = array<i64: 32, 128>}, {pipeline_mode = #tpu.pipeline_mode<synchronous>, transform_indices = @transform_1, window_bounds = array<i64: 64, 32>}, {pipeline_mode = #tpu.pipeline_mode<synchronous>, transform_indices = @transform_2, window_bounds = array<i64: 64, 1>}, {pipeline_mode = #tpu.pipeline_mode<synchronous>, transform_indices = @transform_3, window_bounds = array<i64: 64, 64>}, {pipeline_mode = #tpu.pipeline_mode<synchronous>, transform_indices = @transform_4, window_bounds = array<i64: 64, 1>}, {pipeline_mode = #tpu.pipeline_mode<synchronous>, transform_indices = @transform_5, window_bounds = array<i64: 16, 64>}, {pipeline_mode = #tpu.pipeline_mode<synchronous>, transform_indices = @transform_6, window_bounds = array<i64: 16, 1>}, {transform_indices = @transform_7, window_bounds = array<i64: 16, 128>}]} {
    %c0 = arith.constant 0 : index
    %c0_0 = arith.constant 0 : index
    %0 = vector.load %arg1[%c0, %c0_0] : memref<32x128xbf16, #tpu.memory_space<vmem>>, vector<32x128xbf16>
    %c0_1 = arith.constant 0 : index
    %c0_2 = arith.constant 0 : index
    %1 = vector.load %arg2[%c0_1, %c0_2] : memref<64x32xbf16, #tpu.memory_space<vmem>>, vector<64x32xbf16>
    %cst = arith.constant dense<0.000000e+00> : vector<64x128xf32>
    %2 = tpu.matmul %1, %0, %cst {dimension_numbers = #tpu.dot_dimension_numbers<[1], [0], [0], [1], [0, 0, 1, 1], [], []>} : vector<64x32xbf16>, vector<32x128xbf16>, vector<64x128xf32> -> vector<64x128xf32>
    %c0_3 = arith.constant 0 : index
    %c0_4 = arith.constant 0 : index
    %3 = vector.load %arg3[%c0_3, %c0_4] : memref<64x1xf32, #tpu.memory_space<vmem>>, vector<64x1xf32>
    %4 = vector.broadcast %3 : vector<64x1xf32> to vector<64x128xf32>
    %5 = arith.addf %2, %4 : vector<64x128xf32>
    %cst_5 = arith.constant 0.000000e+00 : f32
    %6 = vector.broadcast %cst_5 : f32 to vector<64x128xf32>
    %7 = arith.maximumf %5, %6 : vector<64x128xf32>
    %8 = arith.truncf %7 : vector<64x128xf32> to vector<64x128xbf16>
    %c0_6 = arith.constant 0 : index
    %c0_7 = arith.constant 0 : index
    %9 = vector.load %arg4[%c0_6, %c0_7] : memref<64x64xbf16, #tpu.memory_space<vmem>>, vector<64x64xbf16>
    %cst_8 = arith.constant dense<0.000000e+00> : vector<64x128xf32>
    %10 = tpu.matmul %9, %8, %cst_8 {dimension_numbers = #tpu.dot_dimension_numbers<[1], [0], [0], [1], [0, 0, 1, 1], [], []>} : vector<64x64xbf16>, vector<64x128xbf16>, vector<64x128xf32> -> vector<64x128xf32>
    %c0_9 = arith.constant 0 : index
    %c0_10 = arith.constant 0 : index
    %11 = vector.load %arg5[%c0_9, %c0_10] : memref<64x1xf32, #tpu.memory_space<vmem>>, vector<64x1xf32>
    %12 = vector.broadcast %11 : vector<64x1xf32> to vector<64x128xf32>
    %13 = arith.addf %10, %12 : vector<64x128xf32>
    %cst_11 = arith.constant 0.000000e+00 : f32
    %14 = vector.broadcast %cst_11 : f32 to vector<64x128xf32>
    %15 = arith.maximumf %13, %14 : vector<64x128xf32>
    %16 = arith.truncf %15 : vector<64x128xf32> to vector<64x128xbf16>
    %c0_12 = arith.constant 0 : index
    %c0_13 = arith.constant 0 : index
    %17 = vector.load %arg6[%c0_12, %c0_13] : memref<16x64xbf16, #tpu.memory_space<vmem>>, vector<16x64xbf16>
    %cst_14 = arith.constant dense<0.000000e+00> : vector<16x128xf32>
    %18 = tpu.matmul %17, %16, %cst_14 {dimension_numbers = #tpu.dot_dimension_numbers<[1], [0], [0], [1], [0, 0, 1, 1], [], []>} : vector<16x64xbf16>, vector<64x128xbf16>, vector<16x128xf32> -> vector<16x128xf32>
    %c0_15 = arith.constant 0 : index
    %c0_16 = arith.constant 0 : index
    %19 = vector.load %arg7[%c0_15, %c0_16] : memref<16x1xf32, #tpu.memory_space<vmem>>, vector<16x1xf32>
    %20 = vector.broadcast %19 : vector<16x1xf32> to vector<16x128xf32>
    %21 = arith.addf %18, %20 : vector<16x128xf32>
    %cst_17 = arith.constant dense<0xFF800000> : vector<128xf32>
    %22 = vector.multi_reduction <maximumf>, %21, %cst_17 [0] : vector<16x128xf32> to vector<128xf32>
    %23 = vector.shape_cast %22 : vector<128xf32> to vector<1x128xf32>
    %24 = vector.broadcast %23 : vector<1x128xf32> to vector<16x128xf32>
    %25 = arith.subf %21, %24 : vector<16x128xf32>
    %26 = math.exp %25 : vector<16x128xf32>
    %cst_18 = arith.constant dense<0.000000e+00> : vector<128xf32>
    %27 = vector.multi_reduction <add>, %26, %cst_18 [0] : vector<16x128xf32> to vector<128xf32>
    %28 = vector.shape_cast %27 : vector<128xf32> to vector<1x128xf32>
    %29 = vector.broadcast %28 : vector<1x128xf32> to vector<16x128xf32>
    %30 = arith.divf %26, %29 : vector<16x128xf32>
    %c0_19 = arith.constant 0 : index
    %c0_20 = arith.constant 0 : index
    %31 = vector.load %arg8[%c0_19, %c0_20] : memref<16x128xf32, #tpu.memory_space<vmem>>, vector<16x128xf32>
    tpu.vector_store %arg8[%c0_19, %c0_20], %30 {strides = array<i32>} : memref<16x128xf32, #tpu.memory_space<vmem>>, vector<16x128xf32>,
    return
  }
  func.func @transform_0(%arg0: i32) -> (i32, i32) {
    %c0_i32 = arith.constant 0 : i32
    %c0_i32_0 = arith.constant 0 : i32
    return %c0_i32, %arg0 : i32, i32
  }
  func.func @transform_1(%arg0: i32) -> (i32, i32) {
    %c0_i32 = arith.constant 0 : i32
    %c0_i32_0 = arith.constant 0 : i32
    %c0_i32_1 = arith.constant 0 : i32
    return %c0_i32, %c0_i32_0 : i32, i32
  }
  func.func @transform_2(%arg0: i32) -> (i32, i32) {
    %c0_i32 = arith.constant 0 : i32
    %c0_i32_0 = arith.constant 0 : i32
    %c0_i32_1 = arith.constant 0 : i32
    return %c0_i32, %c0_i32_0 : i32, i32
  }
  func.func @transform_3(%arg0: i32) -> (i32, i32) {
    %c0_i32 = arith.constant 0 : i32
    %c0_i32_0 = arith.constant 0 : i32
    %c0_i32_1 = arith.constant 0 : i32
    return %c0_i32, %c0_i32_0 : i32, i32
  }
  func.func @transform_4(%arg0: i32) -> (i32, i32) {
    %c0_i32 = arith.constant 0 : i32
    %c0_i32_0 = arith.constant 0 : i32
    %c0_i32_1 = arith.constant 0 : i32
    return %c0_i32, %c0_i32_0 : i32, i32
  }
  func.func @transform_5(%arg0: i32) -> (i32, i32) {
    %c0_i32 = arith.constant 0 : i32
    %c0_i32_0 = arith.constant 0 : i32
    %c0_i32_1 = arith.constant 0 : i32
    return %c0_i32, %c0_i32_0 : i32, i32
  }
  func.func @transform_6(%arg0: i32) -> (i32, i32) {
    %c0_i32 = arith.constant 0 : i32
    %c0_i32_0 = arith.constant 0 : i32
    %c0_i32_1 = arith.constant 0 : i32
    return %c0_i32, %c0_i32_0 : i32, i32
  }
  func.func @transform_7(%arg0: i32) -> (i32, i32) {
    %c0_i32 = arith.constant 0 : i32
    %c0_i32_0 = arith.constant 0 : i32
    return %c0_i32, %arg0 : i32, i32
  }
}

</mosaic_0001>

<llo_original>
// kernel: tpu_custom_call.1
$region0: #{tpu_custom_call.1}
  #allocation0 [shape = 'u32[]', space=smem, size = 0x4, offset = 0x4, fixed_abs, tag = 'smem constant byte address 0x4 - core index']
  #allocation1 [shape = 'u32[144,128]{1,0:T(1,128)}', space=vmem, size = 0x12000, scoped, tag = 'internal scratch']
  %s0 = inlined_call_operand.vmem [shape: bf16[32,384], index: 0, kind: input, shape index: {}]
  %s1 = inlined_call_operand.vmem [shape: bf16[64,32], index: 1, kind: input, shape index: {}]
  %s2 = inlined_call_operand.vmem [shape: f32[64,1], index: 2, kind: input, shape index: {}]
  %s3 = inlined_call_operand.vmem [shape: bf16[64,64], index: 3, kind: input, shape index: {}]
  %s4 = inlined_call_operand.vmem [shape: f32[64,1], index: 4, kind: input, shape index: {}]
  %s5 = inlined_call_operand.vmem [shape: bf16[16,64], index: 5, kind: input, shape index: {}]
  %s6 = inlined_call_operand.vmem [shape: f32[16,1], index: 6, kind: input, shape index: {}]
  %s7 = inlined_call_operand.hbm [shape: f32[16,384], index: 7, kind: output, shape index: {}]
  %s8 = sld [smem:[#allocation0]]
  $region102: #{tpu_custom_call.1} parent=0
    _
  %s10 = ssub.s32 1, %s8
  %s11 = scalar_select 0, %s10, %s8
  $region1: #{tpu_custom_call.1} parent=0
    #allocation2 [shape = 'u8[16384]{0}', space=vmem, size = 0x4000, scoped, tag = 'input window, operand 0']
    #allocation3 [shape = 'u8[16384]{0}', space=vmem, size = 0x4000, scoped, tag = 'output window, operand 0']
    #allocation4 [shape = 's32[2]{0}', space=sflag, size = 0x8, scoped, tag = 'scoped memory for tpu_custom_call.1']
    %12 = vsyncpa [#allocation4], 0
    %s13 = scalar_lea.sflag [#allocation4], 1
    %14 = vsyncpa %s13, 0
    loop: start=0, step=1, limit=5
    $region2: #{tpu_custom_call.1} parent=1 // loop_pre_header
      _
    $region3: #{tpu_custom_call.1} parent=1 // loop_header
      %s16 = sphi 0, %s20
      %p17 = scmp.ge.s32.totalorder %s16, 5
      %s26 = sphi 0, %s28
      %s29 = sphi 0, %s26
      %s30 = sphi 0, %s29
      %s46 = sphi 0, %s30
      %s50 = sphi 0, %s50
      %s52 = sphi 0, %s50
      %s53 = sphi 0, %s52
      %s67 = sphi 0, %s53
      %s71 = sphi 0, %s71
      %s73 = sphi 0, %s71
      %s74 = sphi 0, %s73
      %s88 = sphi 0, %s74
      %s92 = sphi 0, %s92
      %s94 = sphi 0, %s92
      %s95 = sphi 0, %s94
      %s109 = sphi 0, %s95
      %s113 = sphi 0, %s113
      %s115 = sphi 0, %s113
      %s116 = sphi 0, %s115
      %s130 = sphi 0, %s116
      %s134 = sphi 0, %s134
      %s136 = sphi 0, %s134
      %s137 = sphi 0, %s136
      %s151 = sphi 0, %s137
      %s155 = sphi 0, %s155
      %s157 = sphi 0, %s155
      %s158 = sphi 0, %s157
      %s172 = sphi 0, %s158
      %s178 = sphi 0, %s180
      %s181 = sphi 0, %s178
      %s182 = sphi 0, %s181
      %s198 = sphi 0, %s182
    $region4: #{tpu_custom_call.1} parent=1 // loop_header_branch
      %19 = sbr.rel (%p17) target = $region8
    $region5: #{tpu_custom_call.1} parent=1 // loop_body
      %s21 = ssub.s32 %s16, 1
      %s22 = ssub.s32 %s16, 2
      %s23 = sadd.s32 %s16, 1
      %s24 = ssub.s32 %s16, %s23
      %p25 = scmp.eq.s32.totalorder %s24, 0
      %s27 = sadd.s32 %s26, 1
      %s28 = scalar_select %p25, %s26, %s27
      %p31 = pneg %p25
      %p32 = scmp.eq.s32.totalorder %s16, 2
      %p33 = por %p31, %p32
      %p34 = scmp.ne.s32.totalorder %s26, %s29
      %p35 = scmp.eq.s32.totalorder %s16, 0
      %p36 = por %p34, %p35
      %p37 = scmp.ne.s32.totalorder %s26, %s29
      %p38 = scmp.eq.s32.totalorder %s21, 2
      %p39 = por %p37, %p38
      %p40 = scmp.ne.s32.totalorder %s29, %s30
      %p41 = scmp.eq.s32.totalorder %s21, 0
      %p42 = por %p40, %p41
      %p43 = scmp.ne.s32.totalorder %s29, %s30
      %p44 = scmp.eq.s32.totalorder %s22, 2
      %p45 = por %p43, %p44
      %p47 = scmp.ne.s32.totalorder %s30, %s46
      %p48 = scmp.eq.s32.totalorder %s22, 0
      %p49 = por %p47, %p48
      %s51 = sadd.s32 %s50, 1
      %p54 = scmp.eq.s32.totalorder %s16, 2
      %p55 = scmp.ne.s32.totalorder %s50, %s52
      %p56 = scmp.eq.s32.totalorder %s16, 0
      %p57 = por %p55, %p56
      %p58 = scmp.ne.s32.totalorder %s50, %s52
      %p59 = scmp.eq.s32.totalorder %s21, 2
      %p60 = por %p58, %p59
      %p61 = scmp.ne.s32.totalorder %s52, %s53
      %p62 = scmp.eq.s32.totalorder %s21, 0
      %p63 = por %p61, %p62
      %p64 = scmp.ne.s32.totalorder %s52, %s53
      %p65 = scmp.eq.s32.totalorder %s22, 2
      %p66 = por %p64, %p65
      %p68 = scmp.ne.s32.totalorder %s53, %s67
      %p69 = scmp.eq.s32.totalorder %s22, 0
      %p70 = por %p68, %p69
      %s72 = sadd.s32 %s71, 1
      %p75 = scmp.eq.s32.totalorder %s16, 2
      %p76 = scmp.ne.s32.totalorder %s71, %s73
      %p77 = scmp.eq.s32.totalorder %s16, 0
      %p78 = por %p76, %p77
      %p79 = scmp.ne.s32.totalorder %s71, %s73
      %p80 = scmp.eq.s32.totalorder %s21, 2
      %p81 = por %p79, %p80
      %p82 = scmp.ne.s32.totalorder %s73, %s74
      %p83 = scmp.eq.s32.totalorder %s21, 0
      %p84 = por %p82, %p83
      %p85 = scmp.ne.s32.totalorder %s73, %s74
      %p86 = scmp.eq.s32.totalorder %s22, 2
      %p87 = por %p85, %p86
      %p89 = scmp.ne.s32.totalorder %s74, %s88
      %p90 = scmp.eq.s32.totalorder %s22, 0
      %p91 = por %p89, %p90
      %s93 = sadd.s32 %s92, 1
      %p96 = scmp.eq.s32.totalorder %s16, 2
      %p97 = scmp.ne.s32.totalorder %s92, %s94
      %p98 = scmp.eq.s32.totalorder %s16, 0
      %p99 = por %p97, %p98
      %p100 = scmp.ne.s32.totalorder %s92, %s94
      %p101 = scmp.eq.s32.totalorder %s21, 2
      %p102 = por %p100, %p101
      %p103 = scmp.ne.s32.totalorder %s94, %s95
      %p104 = scmp.eq.s32.totalorder %s21, 0
      %p105 = por %p103, %p104
      %p106 = scmp.ne.s32.totalorder %s94, %s95
      %p107 = scmp.eq.s32.totalorder %s22, 2
      %p108 = por %p106, %p107
      %p110 = scmp.ne.s32.totalorder %s95, %s109
      %p111 = scmp.eq.s32.totalorder %s22, 0
      %p112 = por %p110, %p111
      %s114 = sadd.s32 %s113, 1
      %p117 = scmp.eq.s32.totalorder %s16, 2
      %p118 = scmp.ne.s32.totalorder %s113, %s115
      %p119 = scmp.eq.s32.totalorder %s16, 0
      %p120 = por %p118, %p119
      %p121 = scmp.ne.s32.totalorder %s113, %s115
      %p122 = scmp.eq.s32.totalorder %s21, 2
      %p123 = por %p121, %p122
      %p124 = scmp.ne.s32.totalorder %s115, %s116
      %p125 = scmp.eq.s32.totalorder %s21, 0
      %p126 = por %p124, %p125
      %p127 = scmp.ne.s32.totalorder %s115, %s116
      %p128 = scmp.eq.s32.totalorder %s22, 2
      %p129 = por %p127, %p128
      %p131 = scmp.ne.s32.totalorder %s116, %s130
      %p132 = scmp.eq.s32.totalorder %s22, 0
      %p133 = por %p131, %p132
      %s135 = sadd.s32 %s134, 1
      %p138 = scmp.eq.s32.totalorder %s16, 2
      %p139 = scmp.ne.s32.totalorder %s134, %s136
      %p140 = scmp.eq.s32.totalorder %s16, 0
      %p141 = por %p139, %p140
      %p142 = scmp.ne.s32.totalorder %s134, %s136
      %p143 = scmp.eq.s32.totalorder %s21, 2
      %p144 = por %p142, %p143
      %p145 = scmp.ne.s32.totalorder %s136, %s137
      %p146 = scmp.eq.s32.totalorder %s21, 0
      %p147 = por %p145, %p146
      %p148 = scmp.ne.s32.totalorder %s136, %s137
      %p149 = scmp.eq.s32.totalorder %s22, 2
      %p150 = por %p148, %p149
      %p152 = scmp.ne.s32.totalorder %s137, %s151
      %p153 = scmp.eq.s32.totalorder %s22, 0
      %p154 = por %p152, %p153
      %s156 = sadd.s32 %s155, 1
      %p159 = scmp.eq.s32.totalorder %s16, 2
      %p160 = scmp.ne.s32.totalorder %s155, %s157
      %p161 = scmp.eq.s32.totalorder %s16, 0
      %p162 = por %p160, %p161
      %p163 = scmp.ne.s32.totalorder %s155, %s157
      %p164 = scmp.eq.s32.totalorder %s21, 2
      %p165 = por %p163, %p164
      %p166 = scmp.ne.s32.totalorder %s157, %s158
      %p167 = scmp.eq.s32.totalorder %s21, 0
      %p168 = por %p166, %p167
      %p169 = scmp.ne.s32.totalorder %s157, %s158
      %p170 = scmp.eq.s32.totalorder %s22, 2
      %p171 = por %p169, %p170
      %p173 = scmp.ne.s32.totalorder %s158, %s172
      %p174 = scmp.eq.s32.totalorder %s22, 0
      %p175 = por %p173, %p174
      %s176 = ssub.s32 %s16, %s23
      %p177 = scmp.eq.s32.totalorder %s176, 0
      %s179 = sadd.s32 %s178, 1
      %s180 = scalar_select %p177, %s178, %s179
      %p183 = pneg %p177
      %p184 = scmp.eq.s32.totalorder %s16, 2
      %p185 = por %p183, %p184
      %p186 = scmp.ne.s32.totalorder %s178, %s181
      %p187 = scmp.eq.s32.totalorder %s16, 0
      %p188 = por %p186, %p187
      %p189 = scmp.ne.s32.totalorder %s178, %s181
      %p190 = scmp.eq.s32.totalorder %s21, 2
      %p191 = por %p189, %p190
      %p192 = scmp.ne.s32.totalorder %s181, %s182
      %p193 = scmp.eq.s32.totalorder %s21, 0
      %p194 = por %p192, %p193
      %p195 = scmp.ne.s32.totalorder %s181, %s182
      %p196 = scmp.eq.s32.totalorder %s22, 2
      %p197 = por %p195, %p196
      %p199 = scmp.ne.s32.totalorder %s182, %s198
      %p200 = scmp.eq.s32.totalorder %s22, 0
      %p201 = por %p199, %p200
      %p202 = scmp.le.s32.totalorder 1, %s16
      %p203 = scmp.lt.s32.totalorder %s16, 4
      %p204 = pnand %p202, %p203
      %p205 = pneg %p204
      // Predicated region
      $region9: #{tpu_custom_call.1} parent=5 // pred_check
        _
      $region10: #{tpu_custom_call.1} parent=5 // pred_check_branch
        %207 = sbr.rel (%p204) target = $region12
      $region11: #{tpu_custom_call.1} parent=5 // pred_region
        %s208 = ssub.s32 %s16, 1
        // Predicated region
        $region13: #{tpu_custom_call.1} parent=11 // pred_check
          %p209 = pneg %p63
        $region14: #{tpu_custom_call.1} parent=11 // pred_check_branch
          %211 = sbr.rel (%p209) target = $region16
        $region15: #{tpu_custom_call.1} parent=11 // pred_region
          _
        $region16: #{tpu_custom_call.1} parent=11 // pred_fallthru
          _
        // Predicated region
        $region17: #{tpu_custom_call.1} parent=11 // pred_check
          %p212 = pneg %p84
        $region18: #{tpu_custom_call.1} parent=11 // pred_check_branch
          %214 = sbr.rel (%p212) target = $region20
        $region19: #{tpu_custom_call.1} parent=11 // pred_region
          _
        $region20: #{tpu_custom_call.1} parent=11 // pred_fallthru
          _
        // Predicated region
        $region21: #{tpu_custom_call.1} parent=11 // pred_check
          %p215 = pneg %p105
        $region22: #{tpu_custom_call.1} parent=11 // pred_check_branch
          %217 = sbr.rel (%p215) target = $region24
        $region23: #{tpu_custom_call.1} parent=11 // pred_region
          _
        $region24: #{tpu_custom_call.1} parent=11 // pred_fallthru
          _
        // Predicated region
        $region25: #{tpu_custom_call.1} parent=11 // pred_check
          %p218 = pneg %p126
        $region26: #{tpu_custom_call.1} parent=11 // pred_check_branch
          %220 = sbr.rel (%p218) target = $region28
        $region27: #{tpu_custom_call.1} parent=11 // pred_region
          _
        $region28: #{tpu_custom_call.1} parent=11 // pred_fallthru
          _
        // Predicated region
        $region29: #{tpu_custom_call.1} parent=11 // pred_check
          %p221 = pneg %p147
        $region30: #{tpu_custom_call.1} parent=11 // pred_check_branch
          %223 = sbr.rel (%p221) target = $region32
        $region31: #{tpu_custom_call.1} parent=11 // pred_region
          _
        $region32: #{tpu_custom_call.1} parent=11 // pred_fallthru
          _
        // Predicated region
        $region33: #{tpu_custom_call.1} parent=11 // pred_check
          %p224 = pneg %p168
        $region34: #{tpu_custom_call.1} parent=11 // pred_check_branch
          %226 = sbr.rel (%p224) target = $region36
        $region35: #{tpu_custom_call.1} parent=11 // pred_region
          _
        $region36: #{tpu_custom_call.1} parent=11 // pred_fallthru
          _
      $region12: #{tpu_custom_call.1} parent=5 // pred_fallthru
        _
      %p227 = scmp.lt.s32.totalorder %s16, 3
      // Predicated region
      $region37: #{tpu_custom_call.1} parent=5 // pred_check
        %p228 = pneg %p227
      $region38: #{tpu_custom_call.1} parent=5 // pred_check_branch
        %230 = sbr.rel (%p228) target = $region40
      $region39: #{tpu_custom_call.1} parent=5 // pred_region
        // Predicated region
        $region41: #{tpu_custom_call.1} parent=39 // pred_check
          %p231 = pneg %p36
        $region42: #{tpu_custom_call.1} parent=39 // pred_check_branch
          %233 = sbr.rel (%p231) target = $region44
        $region43: #{tpu_custom_call.1} parent=39 // pred_region
          %s234 = sand.u32 %s26, 1
          %s235 = sand.u32 %s26, 1
          %s236 = smul.addr %s235, 16
          %s237 = scalar_lea.vmem [#allocation2], %s236
          %s238 = smul.addr %s16, 4
          %s239 = scalar_lea.vmem %s0, %s238
          // Predicated region
          $region45: #{tpu_custom_call.1} parent=43 // pred_check
            _
          $region46: #{tpu_custom_call.1} parent=43 // pred_check_branch
            %241 = sbr.rel (0) target = $region48
          $region47: #{tpu_custom_call.1} parent=43 // pred_region
            // Predicated region
            $region49: #{tpu_custom_call.1} parent=47 // pred_check
              _
            $region50: #{tpu_custom_call.1} parent=47 // pred_check_branch
              %243 = sbr.rel target = $region52
            $region51: #{tpu_custom_call.1} parent=47 // pred_region
              // Predicated region
              $region64: #{tpu_custom_call.1} parent=51 // pred_check
                _
              $region65: #{tpu_custom_call.1} parent=51 // pred_check_branch
                %265 = sbr.rel (0) target = $region67
              $region66: #{tpu_custom_call.1} parent=51 // pred_region
                loop: start=0, step=1, limit=1
                $region68: #{tpu_custom_call.1} parent=66 // loop_pre_header
                  _
                $region69: #{tpu_custom_call.1} parent=66 // loop_header
                  %s267 = sphi 0, %s271
                  %p268 = scmp.ge.s32.totalorder %s267, 1
                  %s272 = sphi %s239, %s239
                  %s273 = sphi %s237, %s237
                $region70: #{tpu_custom_call.1} parent=66 // loop_header_branch
                  %270 = sbr.rel (%p268) target = $region74
                $region71: #{tpu_custom_call.1} parent=66 // loop_body
                  _
                $region72: #{tpu_custom_call.1} parent=66 // loop_footer
                  %s271 = sadd.s32 1, %s267
                $region73: #{tpu_custom_call.1} parent=66 // loop_footer_branch
                  %266 = sbr.rel target = $region69
                $region74: #{tpu_custom_call.1} parent=66 // loop_exit
                  _
                %s275 = ssub.s32 16, 1
                loop: start=0, step=1, limit=1
                $region75: #{tpu_custom_call.1} parent=66 // loop_pre_header
                  _
                $region76: #{tpu_custom_call.1} parent=66 // loop_header
                  %s277 = sphi 0, %s281
                  %p278 = scmp.ge.s32.totalorder %s277, 1
                  %s282 = sphi %s239, %s239
                  %s283 = sphi %s237, %s237
                $region77: #{tpu_custom_call.1} parent=66 // loop_header_branch
                  %280 = sbr.rel (%p278) target = $region81
                $region78: #{tpu_custom_call.1} parent=66 // loop_body
                  %v284 = vld [vmem:[%s282] sm:%s275]
                  %285 = vst [vmem:[%s283] sm:%s275] %v284
                  %v286 = vld [vmem:[%s282 + $0xc] sm:%s275]
                  %287 = vst [vmem:[%s283 + $0x4] sm:%s275] %v286
                  %v288 = vld [vmem:[%s282 + $0x18] sm:%s275]
                  %289 = vst [vmem:[%s283 + $0x8] sm:%s275] %v288
                  %v290 = vld [vmem:[%s282 + $0x24] sm:%s275]
                  %291 = vst [vmem:[%s283 + $0xc] sm:%s275] %v290
                $region79: #{tpu_custom_call.1} parent=66 // loop_footer
                  %s281 = sadd.s32 1, %s277
                $region80: #{tpu_custom_call.1} parent=66 // loop_footer_branch
                  %276 = sbr.rel target = $region76
                $region81: #{tpu_custom_call.1} parent=66 // loop_exit
                  _
              $region67: #{tpu_custom_call.1} parent=51 // pred_fallthru
                _
            $region52: #{tpu_custom_call.1} parent=47 // pred_fallthru
              _
            // Predicated region
            $region53: #{tpu_custom_call.1} parent=47 // pred_check
              _
            $region54: #{tpu_custom_call.1} parent=47 // pred_check_branch
              %245 = sbr.rel (0) target = $region56
            $region55: #{tpu_custom_call.1} parent=47 // pred_region
              %s247 = ssub.s32 16, 1
              loop: start=0, step=1, limit=1
              $region57: #{tpu_custom_call.1} parent=55 // loop_pre_header
                _
              $region58: #{tpu_custom_call.1} parent=55 // loop_header
                %s249 = sphi 0, %s253
                %p250 = scmp.ge.s32.totalorder %s249, 1
                %s254 = sphi %s239, %s239
                %s255 = sphi %s237, %s237
              $region59: #{tpu_custom_call.1} parent=55 // loop_header_branch
                %252 = sbr.rel (%p250) target = $region63
              $region60: #{tpu_custom_call.1} parent=55 // loop_body
                %v256 = vld [vmem:[%s254] sm:%s247]
                %257 = vst [vmem:[%s255] sm:%s247] %v256
                %v258 = vld [vmem:[%s254 + $0xc] sm:%s247]
                %259 = vst [vmem:[%s255 + $0x4] sm:%s247] %v258
                %v260 = vld [vmem:[%s254 + $0x18] sm:%s247]
                %261 = vst [vmem:[%s255 + $0x8] sm:%s247] %v260
                %v262 = vld [vmem:[%s254 + $0x24] sm:%s247]
                %263 = vst [vmem:[%s255 + $0xc] sm:%s247] %v262
              $region61: #{tpu_custom_call.1} parent=55 // loop_footer
                %s253 = sadd.s32 1, %s249
              $region62: #{tpu_custom_call.1} parent=55 // loop_footer_branch
                %248 = sbr.rel target = $region58
              $region63: #{tpu_custom_call.1} parent=55 // loop_exit
                _
            $region56: #{tpu_custom_call.1} parent=47 // pred_fallthru
              _
          $region48: #{tpu_custom_call.1} parent=43 // pred_fallthru
            _
          %292 = vnop
        $region44: #{tpu_custom_call.1} parent=39 // pred_fallthru
          _
      $region40: #{tpu_custom_call.1} parent=5 // pred_fallthru
        _
      %p293 = scmp.le.s32.totalorder 1, %s16
      %p294 = scmp.lt.s32.totalorder %s16, 4
      %p295 = pnand %p293, %p294
      %p296 = pneg %p295
      // Predicated region
      $region82: #{tpu_custom_call.1} parent=5 // pred_check
        _
      $region83: #{tpu_custom_call.1} parent=5 // pred_check_branch
        %298 = sbr.rel (%p295) target = $region85
      $region84: #{tpu_custom_call.1} parent=5 // pred_region
        %s299 = ssub.s32 %s16, 1
        %s300 = sand.u32 %s29, 1
        %s301 = sand.u32 %s29, 1
        %s302 = smul.addr %s301, 16
        %s303 = scalar_lea.vmem [#allocation2], %s302
        // Predicated region
        $region86: #{tpu_custom_call.1} parent=84 // pred_check
          %p304 = pneg %p42
        $region87: #{tpu_custom_call.1} parent=84 // pred_check_branch
          %306 = sbr.rel (%p304) target = $region89
        $region88: #{tpu_custom_call.1} parent=84 // pred_region
          _
        $region89: #{tpu_custom_call.1} parent=84 // pred_fallthru
          _
        %s307 = sand.u32 %s29, 1
        %s308 = sand.u32 %s29, 1
        %s309 = smul.addr %s308, 16
        %s310 = scalar_lea.vmem [#allocation2], %s309
        %p311 = pneg %p42
        %p312 = pneg %p39
        %p313 = pneg %p63
        %p314 = pneg %p60
        %p315 = pneg %p84
        %p316 = pneg %p81
        %p317 = pneg %p105
        %p318 = pneg %p102
        %p319 = pneg %p126
        %p320 = pneg %p123
        %p321 = pneg %p147
        %p322 = pneg %p144
        %p323 = pneg %p168
        %p324 = pneg %p165
        %p325 = pneg %p194
        %p326 = pneg %p191
        %s327 = sand.u32 %s181, 1
        %s328 = scalar_lea.sflag [#allocation4], %s327
        %s329 = sand.u32 %s181, 1
        %s330 = smul.addr %s329, 16
        %s331 = scalar_lea.vmem [#allocation3], %s330
        %v333 = vld [vmem:[%s303] sm:$0xf]
        %v334 = vld [vmem:[%s303 + $0x4] sm:$0xf]
        %v335 = vld [vmem:[%s303 + $0x8] sm:$0xf]
        %v336 = vld [vmem:[%s303 + $0xc] sm:$0xf]
        %v337 = vld [vmem:[%s1] sm:$0xf]
        %v338 = vld [vmem:[%s1 + $0x4] sm:$0xf]
        %v339 = vld [vmem:[%s1 + $0x8] sm:$0xf]
        %v340 = vld [vmem:[%s1 + $0xc] sm:$0xf]
        %v341 = vld [vmem:[%s1 + $0x10] sm:$0xf]
        %v342 = vld [vmem:[%s1 + $0x14] sm:$0xf]
        %v343 = vld [vmem:[%s1 + $0x18] sm:$0xf]
        %v344 = vld [vmem:[%s1 + $0x1c] sm:$0xf]
        %v345 = vld [vmem:[%s2] sm:$0xff]
        %v346 = vld [vmem:[%s2 + $0x8] sm:$0xff]
        %v347 = vld [vmem:[%s2 + $0x10] sm:$0xff]
        %v348 = vld [vmem:[%s2 + $0x18] sm:$0xff]
        %v349 = vld [vmem:[%s2 + $0x20] sm:$0xff]
        %v350 = vld [vmem:[%s2 + $0x28] sm:$0xff]
        %v351 = vld [vmem:[%s2 + $0x30] sm:$0xff]
        %v352 = vld [vmem:[%s2 + $0x38] sm:$0xff]
        %354 = vset.pattern.permute.xlu0 0
        %355 = vperm.xlu0 %354, %v345
        %v356 = vpop.permute.xlu0 %355
        %359 = vset.pattern.permute.xlu0 0
        %360 = vperm.xlu0 %359, %v346
        %v361 = vpop.permute.xlu0 %360
        %364 = vset.pattern.permute.xlu0 0
        %365 = vperm.xlu0 %364, %v347
        %v366 = vpop.permute.xlu0 %365
        %369 = vset.pattern.permute.xlu0 0
        %370 = vperm.xlu0 %369, %v348
        %v371 = vpop.permute.xlu0 %370
        %374 = vset.pattern.permute.xlu0 0
        %375 = vperm.xlu0 %374, %v349
        %v376 = vpop.permute.xlu0 %375
        %379 = vset.pattern.permute.xlu0 0
        %380 = vperm.xlu0 %379, %v350
        %v381 = vpop.permute.xlu0 %380
        %384 = vset.pattern.permute.xlu0 0
        %385 = vperm.xlu0 %384, %v351
        %v386 = vpop.permute.xlu0 %385
        %389 = vset.pattern.permute.xlu0 0
        %390 = vperm.xlu0 %389, %v352
        %v391 = vpop.permute.xlu0 %390
        %v401 = vunpack.c.l.b16 %v337
        %v402 = vunpack.c.l.b16 %v338
        %v403 = vunpack.c.l.b16 %v339
        %v404 = vunpack.c.l.b16 %v340
        %v405 = vunpack.c.l.b16 %v341
        %v406 = vunpack.c.l.b16 %v342
        %v407 = vunpack.c.l.b16 %v343
        %v408 = vunpack.c.l.b16 %v344
        %v409 = vpack.c.b16 %v402, %v401
        %v410 = vpack.c.b16 %v404, %v403
        %v411 = vpack.c.b16 %v406, %v405
        %v412 = vpack.c.b16 %v408, %v407
        %v417 = vunpack.c.l.b16 %v333
        %v418 = vunpack.c.l.b16 %v334
        %v419 = vunpack.c.l.b16 %v335
        %v420 = vunpack.c.l.b16 %v336
        %v421 = vpack.c.b16 %v418, %v417
        %v422 = vpack.c.b16 %v420, %v419
        %vm425 = vcmask 261120
        %v427 = vsel %vm425, %v409, 0
        %v430 = vsel %vm425, %v410, 0
        %v433 = vsel %vm425, %v411, 0
        %v436 = vsel %vm425, %v412, 0
        %438 = vmatprep.subr.bf16.mxu0 0
        %439 = vmatpush1.bf16.msra.mxu0 0
        %440 = vmatprep.subr.bf16.mxu0 0
        %441 = vmatpush1.bf16.msra.mxu0 0
        %442 = vmatprep.subr.bf16.mxu0 0
        %443 = vmatpush1.bf16.msra.mxu0 0
        %444 = vmatprep.subr.bf16.mxu0 0
        %445 = vmatpush1.bf16.msra.mxu0 0
        %446 = vmatprep.subr.bf16.mxu0 0
        %447 = vmatpush1.bf16.msra.mxu0 0
        %448 = vmatprep.subr.bf16.mxu0 0
        %449 = vmatpush1.bf16.msra.mxu0 0
        %450 = vmatprep.subr.bf16.mxu0 0
        %451 = vmatpush1.bf16.msra.mxu0 %v422
        %452 = vmatprep.subr.bf16.mxu0 0
        %453 = vmatpush1.bf16.msra.mxu0 %v421
        %454 = vmatprep.subr.bf16.mxu0 0
        %455 = vmatpush2.bf16.msra.mxu0 0
        %456 = vmatprep.subr.bf16.mxu0 0
        %457 = vmatpush2.bf16.msra.mxu0 0
        %458 = vmatprep.subr.bf16.mxu0 0
        %459 = vmatpush2.bf16.msra.mxu0 0
        %460 = vmatprep.subr.bf16.mxu0 0
        %461 = vmatpush2.bf16.msra.mxu0 0
        %462 = vmatprep.subr.bf16.mxu0 0
        %463 = vmatpush2.bf16.msra.mxu0 0
        %464 = vmatprep.subr.bf16.mxu0 0
        %465 = vmatpush2.bf16.msra.mxu0 0
        %466 = vmatprep.subr.bf16.mxu0 0
        %467 = vmatpush2.bf16.msra.mxu0 0
        %468 = vmatprep.subr.bf16.mxu0 0
        %469 = vmatpush2.bf16.msra.mxu0 0
        %470 = vmatprep.mubr.bf16.mxu0 0
        %471 = vmatmul.mubr.bf16.gmra.mxu0 %v427
        %v472 = vpop.f32.mrf.mxu0
        %v473 = vadd.f32 %v356, %v472
        %v474 = vpop.f32.mrf.mxu0
        %v475 = vpop.f32.mrf.mxu0
        %v476 = vadd.f32 %v361, %v475
        %v477 = vpop.f32.mrf.mxu0
        %478 = vmatprep.mubr.bf16.mxu0 0
        %479 = vmatmul.mubr.bf16.gmra.mxu0 %v430
        %v480 = vpop.f32.mrf.mxu0
        %v481 = vadd.f32 %v366, %v480
        %v482 = vpop.f32.mrf.mxu0
        %v483 = vpop.f32.mrf.mxu0
        %v484 = vadd.f32 %v371, %v483
        %v485 = vpop.f32.mrf.mxu0
        %486 = vmatprep.mubr.bf16.mxu0 0
        %487 = vmatmul.mubr.bf16.gmra.mxu0 %v433
        %v488 = vpop.f32.mrf.mxu0
        %v489 = vadd.f32 %v376, %v488
        %v490 = vpop.f32.mrf.mxu0
        %v491 = vpop.f32.mrf.mxu0
        %v492 = vadd.f32 %v381, %v491
        %v493 = vpop.f32.mrf.mxu0
        %494 = vmatprep.mubr.bf16.mxu0 0
        %495 = vmatmul.mubr.bf16.gmra.mxu0 %v436
        %v496 = vpop.f32.mrf.mxu0
        %v497 = vadd.f32 %v386, %v496
        %v498 = vpop.f32.mrf.mxu0
        %v499 = vpop.f32.mrf.mxu0
        %v500 = vadd.f32 %v391, %v499
        %v501 = vpop.f32.mrf.mxu0
        %502 = vdwg.mxu0
        %v503 = vmax.f32 %v473, 0.0
        %v504 = vmax.f32 %v476, 0.0
        %v505 = vmax.f32 %v481, 0.0
        %v506 = vmax.f32 %v484, 0.0
        %v507 = vmax.f32 %v489, 0.0
        %v508 = vmax.f32 %v492, 0.0
        %v509 = vmax.f32 %v497, 0.0
        %v510 = vmax.f32 %v500, 0.0
        %v511 = vpack.c.bf16 %v504, %v503
        %v512 = vpack.c.bf16 %v506, %v505
        %v513 = vpack.c.bf16 %v508, %v507
        %v514 = vpack.c.bf16 %v510, %v509
        %v515 = vld [vmem:[%s3] sm:$0xf]
        %v516 = vld [vmem:[%s3 + $0x4] sm:$0xf]
        %v517 = vld [vmem:[%s3 + $0x8] sm:$0xf]
        %v518 = vld [vmem:[%s3 + $0xc] sm:$0xf]
        %v519 = vld [vmem:[%s3 + $0x10] sm:$0xf]
        %v520 = vld [vmem:[%s3 + $0x14] sm:$0xf]
        %v521 = vld [vmem:[%s3 + $0x18] sm:$0xf]
        %v522 = vld [vmem:[%s3 + $0x1c] sm:$0xf]
        %v523 = vld [vmem:[%s4] sm:$0xff]
        %v524 = vld [vmem:[%s4 + $0x8] sm:$0xff]
        %v525 = vld [vmem:[%s4 + $0x10] sm:$0xff]
        %v526 = vld [vmem:[%s4 + $0x18] sm:$0xff]
        %v527 = vld [vmem:[%s4 + $0x20] sm:$0xff]
        %v528 = vld [vmem:[%s4 + $0x28] sm:$0xff]
        %v529 = vld [vmem:[%s4 + $0x30] sm:$0xff]
        %v530 = vld [vmem:[%s4 + $0x38] sm:$0xff]
        %532 = vset.pattern.permute.xlu0 0
        %533 = vperm.xlu0 %532, %v523
        %v534 = vpop.permute.xlu0 %533
        %537 = vset.pattern.permute.xlu0 0
        %538 = vperm.xlu0 %537, %v524
        %v539 = vpop.permute.xlu0 %538
        %542 = vset.pattern.permute.xlu0 0
        %543 = vperm.xlu0 %542, %v525
        %v544 = vpop.permute.xlu0 %543
        %547 = vset.pattern.permute.xlu0 0
        %548 = vperm.xlu0 %547, %v526
        %v549 = vpop.permute.xlu0 %548
        %552 = vset.pattern.permute.xlu0 0
        %553 = vperm.xlu0 %552, %v527
        %v554 = vpop.permute.xlu0 %553
        %557 = vset.pattern.permute.xlu0 0
        %558 = vperm.xlu0 %557, %v528
        %v559 = vpop.permute.xlu0 %558
        %562 = vset.pattern.permute.xlu0 0
        %563 = vperm.xlu0 %562, %v529
        %v564 = vpop.permute.xlu0 %563
        %567 = vset.pattern.permute.xlu0 0
        %568 = vperm.xlu0 %567, %v530
        %v569 = vpop.permute.xlu0 %568
        %v579 = vunpack.c.l.b16 %v515
        %v580 = vunpack.c.l.b16 %v516
        %v581 = vunpack.c.l.b16 %v517
        %v582 = vunpack.c.l.b16 %v518
        %v583 = vunpack.c.l.b16 %v519
        %v584 = vunpack.c.l.b16 %v520
        %v585 = vunpack.c.l.b16 %v521
        %v586 = vunpack.c.l.b16 %v522
        %v587 = vpack.c.b16 %v580, %v579
        %v588 = vpack.c.b16 %v582, %v581
        %v589 = vpack.c.b16 %v584, %v583
        %v590 = vpack.c.b16 %v586, %v585
        %vm591 = vcmask 523264
        %v593 = vsel %vm591, %v587, 0
        %v596 = vsel %vm591, %v588, 0
        %v599 = vsel %vm591, %v589, 0
        %v602 = vsel %vm591, %v590, 0
        %604 = vmatprep.subr.bf16.mxu0 0
        %605 = vmatpush1.bf16.msra.mxu0 0
        %606 = vmatprep.subr.bf16.mxu0 0
        %607 = vmatpush1.bf16.msra.mxu0 0
        %608 = vmatprep.subr.bf16.mxu0 0
        %609 = vmatpush1.bf16.msra.mxu0 0
        %610 = vmatprep.subr.bf16.mxu0 0
        %611 = vmatpush1.bf16.msra.mxu0 0
        %612 = vmatprep.subr.bf16.mxu0 0
        %613 = vmatpush1.bf16.msra.mxu0 %v514
        %614 = vmatprep.subr.bf16.mxu0 0
        %615 = vmatpush1.bf16.msra.mxu0 %v513
        %616 = vmatprep.subr.bf16.mxu0 0
        %617 = vmatpush1.bf16.msra.mxu0 %v512
        %618 = vmatprep.subr.bf16.mxu0 0
        %619 = vmatpush1.bf16.msra.mxu0 %v511
        %620 = vmatprep.subr.bf16.mxu0 0
        %621 = vmatpush2.bf16.msra.mxu0 0
        %622 = vmatprep.subr.bf16.mxu0 0
        %623 = vmatpush2.bf16.msra.mxu0 0
        %624 = vmatprep.subr.bf16.mxu0 0
        %625 = vmatpush2.bf16.msra.mxu0 0
        %626 = vmatprep.subr.bf16.mxu0 0
        %627 = vmatpush2.bf16.msra.mxu0 0
        %628 = vmatprep.subr.bf16.mxu0 0
        %629 = vmatpush2.bf16.msra.mxu0 0
        %630 = vmatprep.subr.bf16.mxu0 0
        %631 = vmatpush2.bf16.msra.mxu0 0
        %632 = vmatprep.subr.bf16.mxu0 0
        %633 = vmatpush2.bf16.msra.mxu0 0
        %634 = vmatprep.subr.bf16.mxu0 0
        %635 = vmatpush2.bf16.msra.mxu0 0
        %636 = vmatprep.mubr.bf16.mxu0 0
        %637 = vmatmul.mubr.bf16.gmra.mxu0 %v593
        %v638 = vpop.f32.mrf.mxu0
        %v639 = vadd.f32 %v534, %v638
        %v640 = vpop.f32.mrf.mxu0
        %v641 = vpop.f32.mrf.mxu0
        %v642 = vadd.f32 %v539, %v641
        %v643 = vpop.f32.mrf.mxu0
        %644 = vmatprep.mubr.bf16.mxu0 0
        %645 = vmatmul.mubr.bf16.gmra.mxu0 %v596
        %v646 = vpop.f32.mrf.mxu0
        %v647 = vadd.f32 %v544, %v646
        %v648 = vpop.f32.mrf.mxu0
        %v649 = vpop.f32.mrf.mxu0
        %v650 = vadd.f32 %v549, %v649
        %v651 = vpop.f32.mrf.mxu0
        %652 = vmatprep.mubr.bf16.mxu0 0
        %653 = vmatmul.mubr.bf16.gmra.mxu0 %v599
        %v654 = vpop.f32.mrf.mxu0
        %v655 = vadd.f32 %v554, %v654
        %v656 = vpop.f32.mrf.mxu0
        %v657 = vpop.f32.mrf.mxu0
        %v658 = vadd.f32 %v559, %v657
        %v659 = vpop.f32.mrf.mxu0
        %660 = vmatprep.mubr.bf16.mxu0 0
        %661 = vmatmul.mubr.bf16.gmra.mxu0 %v602
        %v662 = vpop.f32.mrf.mxu0
        %v663 = vadd.f32 %v564, %v662
        %v664 = vpop.f32.mrf.mxu0
        %v665 = vpop.f32.mrf.mxu0
        %v666 = vadd.f32 %v569, %v665
        %v667 = vpop.f32.mrf.mxu0
        %668 = vdwg.mxu0
        %v669 = vmax.f32 %v639, 0.0
        %v670 = vmax.f32 %v642, 0.0
        %v671 = vmax.f32 %v647, 0.0
        %v672 = vmax.f32 %v650, 0.0
        %v673 = vmax.f32 %v655, 0.0
        %v674 = vmax.f32 %v658, 0.0
        %v675 = vmax.f32 %v663, 0.0
        %v676 = vmax.f32 %v666, 0.0
        %v677 = vpack.c.bf16 %v670, %v669
        %v678 = vpack.c.bf16 %v672, %v671
        %v679 = vpack.c.bf16 %v674, %v673
        %v680 = vpack.c.bf16 %v676, %v675
        %v681 = vld [vmem:[%s5] sm:$0xf]
        %v682 = vld [vmem:[%s5 + $0x4] sm:$0xf]
        %v683 = vld [vmem:[%s6] sm:$0xff]
        %v684 = vld [vmem:[%s6 + $0x8] sm:$0xff]
        %686 = vset.pattern.permute.xlu0 0
        %687 = vperm.xlu0 %686, %v683
        %v688 = vpop.permute.xlu0 %687
        %691 = vset.pattern.permute.xlu0 0
        %692 = vperm.xlu0 %691, %v684
        %v693 = vpop.permute.xlu0 %692
        %v697 = vunpack.c.l.b16 %v681
        %v698 = vunpack.c.l.b16 %v682
        %v699 = vpack.c.b16 %v698, %v697
        %v701 = vsel %vm591, %v699, 0
        %703 = vmatprep.subr.bf16.mxu0 0
        %704 = vmatpush1.bf16.msra.mxu0 0
        %705 = vmatprep.subr.bf16.mxu0 0
        %706 = vmatpush1.bf16.msra.mxu0 0
        %707 = vmatprep.subr.bf16.mxu0 0
        %708 = vmatpush1.bf16.msra.mxu0 0
        %709 = vmatprep.subr.bf16.mxu0 0
        %710 = vmatpush1.bf16.msra.mxu0 0
        %711 = vmatprep.subr.bf16.mxu0 0
        %712 = vmatpush1.bf16.msra.mxu0 %v680
        %713 = vmatprep.subr.bf16.mxu0 0
        %714 = vmatpush1.bf16.msra.mxu0 %v679
        %715 = vmatprep.subr.bf16.mxu0 0
        %716 = vmatpush1.bf16.msra.mxu0 %v678
        %717 = vmatprep.subr.bf16.mxu0 0
        %718 = vmatpush1.bf16.msra.mxu0 %v677
        %719 = vmatprep.subr.bf16.mxu0 0
        %720 = vmatpush2.bf16.msra.mxu0 0
        %721 = vmatprep.subr.bf16.mxu0 0
        %722 = vmatpush2.bf16.msra.mxu0 0
        %723 = vmatprep.subr.bf16.mxu0 0
        %724 = vmatpush2.bf16.msra.mxu0 0
        %725 = vmatprep.subr.bf16.mxu0 0
        %726 = vmatpush2.bf16.msra.mxu0 0
        %727 = vmatprep.subr.bf16.mxu0 0
        %728 = vmatpush2.bf16.msra.mxu0 0
        %729 = vmatprep.subr.bf16.mxu0 0
        %730 = vmatpush2.bf16.msra.mxu0 0
        %731 = vmatprep.subr.bf16.mxu0 0
        %732 = vmatpush2.bf16.msra.mxu0 0
        %733 = vmatprep.subr.bf16.mxu0 0
        %734 = vmatpush2.bf16.msra.mxu0 0
        %735 = vmatprep.mubr.bf16.mxu0 0
        %736 = vmatmul.mubr.bf16.gmra.mxu0 %v701
        %v737 = vpop.f32.mrf.mxu0
        %v738 = vadd.f32 %v688, %v737
        %v739 = vpop.f32.mrf.mxu0
        %v740 = vpop.f32.mrf.mxu0
        %v741 = vadd.f32 %v693, %v740
        %v742 = vpop.f32.mrf.mxu0
        %743 = vdwg.mxu0
        %v744 = vmax.f32 %v738, %v741
        %v745 = vrot.slane %v744, 4
        %v746 = vmax.f32 %v744, %v745
        %v747 = vrot.slane %v746, 2
        %v748 = vmax.f32 %v746, %v747
        %v749 = vrot.slane %v748, 1
        %v750 = vmax.f32 %v748, %v749
        %v751 = vsub.f32 %v738, %v750
        %v752 = vsub.f32 %v741, %v750
        %v753 = vmul.f32 %v751, 1.442695
        %v754 = vpow.pop %v753
        %v755 = vmul.f32 %v752, 1.442695
        %v756 = vpow.pop %v755
        %v757 = vadd.f32 %v754, %v756
        %v758 = vrot.slane %v757, 4
        %v759 = vadd.f32 %v757, %v758
        %v760 = vrot.slane %v759, 2
        %v761 = vadd.f32 %v759, %v760
        %v762 = vrot.slane %v761, 1
        %v763 = vadd.f32 %v761, %v762
        %v764 = vrcp.pop %v763
        %v765 = vmul.f32 %v754, %v764
        %v766 = vmul.f32 %v756, %v764
        %767 = vst [vmem:[%s331] sm:$0xff] %v765
        %768 = vst [vmem:[%s331 + $0x8] sm:$0xff] %v766
        %s769 = sand.u32 %s181, 1
        %s770 = scalar_lea.sflag [#allocation4], %s769
        %s771 = sand.u32 %s181, 1
        %s772 = smul.addr %s771, 16
        %s773 = scalar_lea.vmem [#allocation3], %s772
        // Predicated region
        $region90: #{tpu_custom_call.1} parent=84 // pred_check
          %p774 = pneg %p191
        $region91: #{tpu_custom_call.1} parent=84 // pred_check_branch
          %776 = sbr.rel (%p774) target = $region93
        $region92: #{tpu_custom_call.1} parent=84 // pred_region
          %s778 = ssub.s32 256, 256
          %779 = vsyncadd %s770, %s778
          %s780 = smul.addr %s21, 128
          %s781 = scalar_lea.hbm %s7, %s780
          %s782 = sshll.u32 %s773, 4
          %s783 = int_to_ptr.vmem [resolvable:$true] %s782
          %788 = dma.vmem_to_hbm [thread:$0]  %s783, 256, %s781, %s770, 128, 384, 8
        $region93: #{tpu_custom_call.1} parent=84 // pred_fallthru
          _
      $region85: #{tpu_custom_call.1} parent=5 // pred_fallthru
        _
      %p789 = scmp.le.s32.totalorder 2, %s16
      // Predicated region
      $region94: #{tpu_custom_call.1} parent=5 // pred_check
        %p790 = pneg %p789
      $region95: #{tpu_custom_call.1} parent=5 // pred_check_branch
        %792 = sbr.rel (%p790) target = $region97
      $region96: #{tpu_custom_call.1} parent=5 // pred_region
        %s793 = ssub.s32 %s16, 2
        // Predicated region
        $region98: #{tpu_custom_call.1} parent=96 // pred_check
          %p794 = pneg %p197
        $region99: #{tpu_custom_call.1} parent=96 // pred_check_branch
          %796 = sbr.rel (%p794) target = $region101
        $region100: #{tpu_custom_call.1} parent=96 // pred_region
          %s797 = sand.u32 %s182, 1
          %s798 = scalar_lea.sflag [#allocation4], %s797
          %s799 = sand.u32 %s182, 1
          %s800 = smul.addr %s799, 16
          %s801 = scalar_lea.vmem [#allocation3], %s800
          %802 = dma.done %s798, 256
        $region101: #{tpu_custom_call.1} parent=96 // pred_fallthru
          _
      $region97: #{tpu_custom_call.1} parent=5 // pred_fallthru
        _
    $region6: #{tpu_custom_call.1} parent=1 // loop_footer
      %s20 = sadd.s32 1, %s16
    $region7: #{tpu_custom_call.1} parent=1 // loop_footer_branch
      %15 = sbr.rel target = $region3
    $region8: #{tpu_custom_call.1} parent=1 // loop_exit
      _
    %803 = vsyncpa [#allocation4], 1
    %s804 = scalar_lea.sflag [#allocation4], 1
    %805 = vsyncpa %s804, 1

</llo_original>
